<compile_context>
chip_gen: v6e
topology: v6e:2x2x1
jax: 0.10.0
libtpu: 0.0.40
codegen_flags: <defaults>
</compile_context>

<pallas_src>
import functools

import jax
import jax.numpy as jnp
from jax.experimental import pallas as pl
from jax.experimental.pallas import tpu as pltpu


def _round_up(x: int, m: int) -> int:
    return pl.cdiv(x, m) * m


def _choose_tk(n: int, tk_max: int) -> int:
    """Contraction tile: multiple of 8 sublanes, balanced so N padding < 8 rows."""
    n8 = _round_up(n, 8)
    if n8 <= tk_max:
        return n8
    n_tiles = pl.cdiv(n, tk_max)
    return _round_up(pl.cdiv(n, n_tiles), 8)


def _make_mse_matmul_kernel(inv_n: float):
    """Pure K-tiled matmul kernel; accumulates directly into the resident out block."""

    def kernel(a_ref, b_ref, out_ref):
        k = pl.program_id(2)

        @pl.when(k == 0)
        def _init():
            out_ref[...] = jnp.zeros_like(out_ref)

        # (tdi, tk) @ (tk, tn) -> (tdi, tn), f32 accumulation on the MXU.
        out_ref[...] += jnp.dot(a_ref[...], b_ref[...],
                                preferred_element_type=jnp.float32)

        @pl.when(k == pl.num_programs(2) - 1)
        def _finalize():
            out_ref[...] = out_ref[...] * jnp.float32(inv_n)

    return kernel


def _custom_mse_xla(pred: jax.Array, true: jax.Array) -> jax.Array:
    """Small-shape fast path: one fused XLA pass beats kernel-launch + padding."""
    n = pred.shape[0]
    return (1.0 / n) * jnp.matmul(jnp.square(true).T, jnp.square(pred - true))


@functools.partial(jax.jit, static_argnames=("tk_max", "tile_out", "mxu_dtype"))
def custom_mse_pallas(pred: jax.Array, true: jax.Array, *, tk_max: int = 1024,
                      tile_out: int = 256, mxu_dtype=jnp.bfloat16) -> jax.Array:
    assert pred.ndim == 2 and pred.shape == true.shape
    n, d = pred.shape

    # Output tiles: 256x256 matches the v6e/v7x MXU and keeps stores lane-dense.
    tdi = tn = tile_out
    d_pad = _round_up(d, tile_out)

    # Contraction tile along N, balanced to minimize zero-row padding.
    tk = _choose_tk(n, tk_max)
    n_pad = _round_up(n, tk)

    # Hoisted precompute (one fused XLA elementwise pass), cast to MXU dtype.
    a_t = jnp.square(true).T.astype(mxu_dtype)            # (d, n)
    b = jnp.square(pred - true).astype(mxu_dtype)          # (n, d)
    a_t = jnp.pad(a_t, ((0, d_pad - d), (0, n_pad - n)))
    b = jnp.pad(b, ((0, n_pad - n), (0, d_pad - d)))

    grid = (d_pad // tdi, d_pad // tn, n_pad // tk)         # (rows, cols, reduce-N)

    out_padded = pl.pallas_call(
        _make_mse_matmul_kernel(1.0 / n),
        out_shape=jax.ShapeDtypeStruct((d_pad, d_pad), jnp.float32),
        grid_spec=pltpu.PrefetchScalarGridSpec(
            num_scalar_prefetch=0,
            grid=grid,
            in_specs=[
                # square(true).T : (tdi, tk) row-tile x k-tile  (transpose-free LHS)
                pl.BlockSpec((tdi, tk), lambda i, j, k: (i, k)),
                # square(pred-true): (tk, tn) k-tile x column-tile
                pl.BlockSpec((tk, tn), lambda i, j, k: (k, j)),
            ],
            # Output block index ignores k -> resident f32 accumulator, no scratch.
            out_specs=pl.BlockSpec((tdi, tn), lambda i, j, k: (i, j)),
        ),
        compiler_params=pltpu.CompilerParams(
            dimension_semantics=("parallel", "parallel", "arbitrary"),
            vmem_limit_bytes=48 << 20,    # safe on v7x (64 MiB phys), ample on v5e/v6e
        ),
    )(a_t, b)

    return out_padded[:d, :d]


def custom_mse(pred: jax.Array, true: jax.Array) -> jax.Array:
    """Public entry point: XLA fast path for tiny shapes, Pallas kernel otherwise."""
    n, d = pred.shape
    if n * d <= 4096:
        return _custom_mse_xla(pred, true)
    return custom_mse_pallas(pred, true)


if __name__ == "__main__":
    key = jax.random.PRNGKey(0)
    k1, k2 = jax.random.split(key)
    N, D = 8, 32                         # small shapes: seq=8, hidden=32
    pred = jax.random.normal(k1, (N, D), dtype=jnp.float32)
    true = jax.random.normal(k2, (N, D), dtype=jnp.float32)

    # Pure-JAX reference of the same math (f32 everywhere).
    ref = (1.0 / N) * jnp.matmul(jnp.square(true).T, jnp.square(pred - true))

    # Exercise the Pallas kernel directly (the public wrapper would take the
    # small-shape XLA fast path at this size).
    out = custom_mse_pallas(pred, true)
    out = jax.block_until_ready(out)
    assert out.shape == (D, D)
    # bf16 MXU operands (f32 accumulation) -> tolerance bounded by operand rounding.
    assert jnp.allclose(out, ref, atol=2e-2, rtol=2e-2), (
        float(jnp.max(jnp.abs(out - ref))))

    # Public wrapper (fast path here) must match the reference exactly-ish too.
    out_pub = jax.block_until_ready(custom_mse(pred, true))
    assert jnp.allclose(out_pub, ref, atol=1e-5, rtol=1e-5)

    print("KERNEL_OK")
</pallas_src>

<mosaic_0001>
module attributes {stable_mosaic.version = 11 : i64} {
  func.func @kernel(%arg0: i32, %arg1: i32, %arg2: i32, %arg3: memref<256x8xbf16, #tpu.memory_space<vmem>>, %arg4: memref<8x256xbf16, #tpu.memory_space<vmem>>, %arg5: memref<256x256xf32, #tpu.memory_space<vmem>>) attributes {dimension_semantics = [#tpu.dimension_semantics<parallel>, #tpu.dimension_semantics<parallel>, #tpu.dimension_semantics<arbitrary>], iteration_bounds = array<i64: 1, 1, 1>, scalar_prefetch = 0 : i64, scratch_operands = 0 : i64, tpu.core_type = #tpu.core_type<tc>, window_params = [{transform_indices = @transform_0, window_bounds = array<i64: 256, 8>}, {transform_indices = @transform_1, window_bounds = array<i64: 8, 256>}, {transform_indices = @transform_2, window_bounds = array<i64: 256, 256>}]} {
    %c0_i32 = arith.constant 0 : i32
    %0 = arith.cmpi eq, %arg2, %c0_i32 : i32
    %1 = arith.extui %0 : i1 to i32
    %c0_i32_0 = arith.constant 0 : i32
    %2 = arith.cmpi ne, %1, %c0_i32_0 : i32
    scf.if %2 {
      %cst_10 = arith.constant 0.000000e+00 : f32
      %12 = vector.broadcast %cst_10 : f32 to vector<256x256xf32>
      %c0_11 = arith.constant 0 : index
      %c0_12 = arith.constant 0 : index
      %13 = vector.load %arg5[%c0_11, %c0_12] : memref<256x256xf32, #tpu.memory_space<vmem>>, vector<256x256xf32>
      tpu.vector_store %arg5[%c0_11, %c0_12], %12 {strides = array<i32>} : memref<256x256xf32, #tpu.memory_space<vmem>>, vector<256x256xf32>,
    } else {
    }
    %c0 = arith.constant 0 : index
    %c0_1 = arith.constant 0 : index
    %3 = vector.load %arg5[%c0, %c0_1] : memref<256x256xf32, #tpu.memory_space<vmem>>, vector<256x256xf32>
    %c0_2 = arith.constant 0 : index
    %c0_3 = arith.constant 0 : index
    %4 = vector.load %arg3[%c0_2, %c0_3] : memref<256x8xbf16, #tpu.memory_space<vmem>>, vector<256x8xbf16>
    %c0_4 = arith.constant 0 : index
    %c0_5 = arith.constant 0 : index
    %5 = vector.load %arg4[%c0_4, %c0_5] : memref<8x256xbf16, #tpu.memory_space<vmem>>, vector<8x256xbf16>
    %cst = arith.constant dense<0.000000e+00> : vector<256x256xf32>
    %6 = tpu.matmul %4, %5, %cst {dimension_numbers = #tpu.dot_dimension_numbers<[1], [0], [0], [1], [0, 0, 1, 1], [], []>} : vector<256x8xbf16>, vector<8x256xbf16>, vector<256x256xf32> -> vector<256x256xf32>
    %7 = arith.addf %3, %6 : vector<256x256xf32>
    %c0_6 = arith.constant 0 : index
    %c0_7 = arith.constant 0 : index
    %8 = vector.load %arg5[%c0_6, %c0_7] : memref<256x256xf32, #tpu.memory_space<vmem>>, vector<256x256xf32>
    tpu.vector_store %arg5[%c0_6, %c0_7], %7 {strides = array<i32>} : memref<256x256xf32, #tpu.memory_space<vmem>>, vector<256x256xf32>,
    %c0_i32_8 = arith.constant 0 : i32
    %9 = arith.cmpi eq, %arg2, %c0_i32_8 : i32
    %10 = arith.extui %9 : i1 to i32
    %c0_i32_9 = arith.constant 0 : i32
    %11 = arith.cmpi ne, %10, %c0_i32_9 : i32
    scf.if %11 {
      %c0_10 = arith.constant 0 : index
      %c0_11 = arith.constant 0 : index
      %12 = vector.load %arg5[%c0_10, %c0_11] : memref<256x256xf32, #tpu.memory_space<vmem>>, vector<256x256xf32>
      %cst_12 = arith.constant 1.250000e-01 : f32
      %13 = vector.broadcast %cst_12 : f32 to vector<256x256xf32>
      %14 = arith.mulf %12, %13 : vector<256x256xf32>
      %c0_13 = arith.constant 0 : index
      %c0_14 = arith.constant 0 : index
      %15 = vector.load %arg5[%c0_13, %c0_14] : memref<256x256xf32, #tpu.memory_space<vmem>>, vector<256x256xf32>
      tpu.vector_store %arg5[%c0_13, %c0_14], %14 {strides = array<i32>} : memref<256x256xf32, #tpu.memory_space<vmem>>, vector<256x256xf32>,
    } else {
    }
    return
  }
  func.func @transform_0(%arg0: i32, %arg1: i32, %arg2: i32) -> (i32, i32) {
    %c0_i32 = arith.constant 0 : i32
    return %arg0, %arg2 : i32, i32
  }
  func.func @transform_1(%arg0: i32, %arg1: i32, %arg2: i32) -> (i32, i32) {
    %c0_i32 = arith.constant 0 : i32
    return %arg2, %arg1 : i32, i32
  }
  func.func @transform_2(%arg0: i32, %arg1: i32, %arg2: i32) -> (i32, i32) {
    %c0_i32 = arith.constant 0 : i32
    return %arg0, %arg1 : i32, i32
  }
}

</mosaic_0001>

<llo_original>
// kernel: square.2
$region0: #{square.2}
  #allocation0 [shape = 's32[1]{0}', space=sflag, size = 0x4, scoped, tag = 'scoped memory for square.2']
  %s0 = inlined_call_operand.vmem [shape: f32[8,32], index: 0, kind: input, shape index: {}, may-alias: {0,1}]
  %s1 = inlined_call_operand.vmem [shape: f32[8,32], index: 1, kind: input, shape index: {}, may-alias: {0,1}]
  %s2 = inlined_call_operand.vmem [shape: bf16[8,32], index: 2, kind: output, shape index: {}]
  %v3 = vld [vmem:[%s0] sm:$0xff]
  %v4 = vld [vmem:[%s1] sm:$0xff]
  %5 = xla_tuple %v3, %v4
  %6 = xla_tuple %5
  %v7 = vmul.f32 %v3, %v4
  %8 = xla_tuple %v7
  %v9 = vpack.c.bf16 0.0, %v7
  %10 = vst [vmem:[%s2] sm:$0xf] %v9

// kernel: custom_mse_pallas.1
$region0: #{custom_mse_pallas.1}
  #allocation0 [shape = 'u32[]', space=smem, size = 0x4, offset = 0x4, fixed_abs, tag = 'smem constant byte address 0x4 - core index']
  #allocation1 [shape = 'u32[144,128]{1,0:T(1,128)}', space=vmem, size = 0x12000, scoped, tag = 'internal scratch']
  %s0 = inlined_call_operand.vmem [shape: bf16[256,8], index: 0, kind: input, shape index: {}]
  %s1 = inlined_call_operand.vmem [shape: bf16[8,256], index: 1, kind: input, shape index: {}]
  %s2 = inlined_call_operand.vmem [shape: f32[256,256], index: 2, kind: output, shape index: {}]
  %s3 = sld [smem:[#allocation0]]
  $region26: #{custom_mse_pallas.1} parent=0
    _
  %s5 = ssub.s32 1, %s3
  %s6 = scalar_select 0, %s5, %s3
  // Predicated region
  $region2: #{custom_mse_pallas.1} parent=0 // pred_check
    _
  $region3: #{custom_mse_pallas.1} parent=0 // pred_check_branch
    %8 = sbr.rel (0) target = $region5
  $region4: #{custom_mse_pallas.1} parent=0 // pred_region
    _
  $region5: #{custom_mse_pallas.1} parent=0 // pred_fallthru
    _
  // Predicated region
  $region6: #{custom_mse_pallas.1} parent=0 // pred_check
    _
  $region7: #{custom_mse_pallas.1} parent=0 // pred_check_branch
    %10 = sbr.rel (0) target = $region9
  $region8: #{custom_mse_pallas.1} parent=0 // pred_region
    _
  $region9: #{custom_mse_pallas.1} parent=0 // pred_fallthru
    _
  %p12 = scmp.eq.s32.totalorder 0, 0
  // Predicated region
  $region10: #{custom_mse_pallas.1} parent=0 // pred_check
    %p13 = pneg %p12
  $region11: #{custom_mse_pallas.1} parent=0 // pred_check_branch
    %15 = sbr.rel (%p13) target = $region13
  $region12: #{custom_mse_pallas.1} parent=0 // pred_region
    %16 = vst [vmem:[%s2] sm:$0xff] 0.0
    %17 = vst [vmem:[%s2 + $0x8] sm:$0xff] 0.0
    %18 = vst [vmem:[%s2 + $0x10] sm:$0xff] 0.0
    %19 = vst [vmem:[%s2 + $0x18] sm:$0xff] 0.0
    %20 = vst [vmem:[%s2 + $0x20] sm:$0xff] 0.0
    %21 = vst [vmem:[%s2 + $0x28] sm:$0xff] 0.0
    %22 = vst [vmem:[%s2 + $0x30] sm:$0xff] 0.0
    %23 = vst [vmem:[%s2 + $0x38] sm:$0xff] 0.0
    %24 = vst [vmem:[%s2 + $0x40] sm:$0xff] 0.0
    %25 = vst [vmem:[%s2 + $0x48] sm:$0xff] 0.0
    %26 = vst [vmem:[%s2 + $0x50] sm:$0xff] 0.0
    %27 = vst [vmem:[%s2 + $0x58] sm:$0xff] 0.0
    %28 = vst [vmem:[%s2 + $0x60] sm:$0xff] 0.0
    %29 = vst [vmem:[%s2 + $0x68] sm:$0xff] 0.0
    %30 = vst [vmem:[%s2 + $0x70] sm:$0xff] 0.0
    %31 = vst [vmem:[%s2 + $0x78] sm:$0xff] 0.0
    %32 = vst [vmem:[%s2 + $0x80] sm:$0xff] 0.0
    %33 = vst [vmem:[%s2 + $0x88] sm:$0xff] 0.0
    %34 = vst [vmem:[%s2 + $0x90] sm:$0xff] 0.0
    %35 = vst [vmem:[%s2 + $0x98] sm:$0xff] 0.0
    %36 = vst [vmem:[%s2 + $0xa0] sm:$0xff] 0.0
    %37 = vst [vmem:[%s2 + $0xa8] sm:$0xff] 0.0
    %38 = vst [vmem:[%s2 + $0xb0] sm:$0xff] 0.0
    %39 = vst [vmem:[%s2 + $0xb8] sm:$0xff] 0.0
    %40 = vst [vmem:[%s2 + $0xc0] sm:$0xff] 0.0
    %41 = vst [vmem:[%s2 + $0xc8] sm:$0xff] 0.0
    %42 = vst [vmem:[%s2 + $0xd0] sm:$0xff] 0.0
    %43 = vst [vmem:[%s2 + $0xd8] sm:$0xff] 0.0
    %44 = vst [vmem:[%s2 + $0xe0] sm:$0xff] 0.0
    %45 = vst [vmem:[%s2 + $0xe8] sm:$0xff] 0.0
    %46 = vst [vmem:[%s2 + $0xf0] sm:$0xff] 0.0
    %47 = vst [vmem:[%s2 + $0xf8] sm:$0xff] 0.0
    %48 = vst [vmem:[%s2 + $0x100] sm:$0xff] 0.0
    %49 = vst [vmem:[%s2 + $0x108] sm:$0xff] 0.0
    %50 = vst [vmem:[%s2 + $0x110] sm:$0xff] 0.0
    %51 = vst [vmem:[%s2 + $0x118] sm:$0xff] 0.0
    %52 = vst [vmem:[%s2 + $0x120] sm:$0xff] 0.0
    %53 = vst [vmem:[%s2 + $0x128] sm:$0xff] 0.0
    %54 = vst [vmem:[%s2 + $0x130] sm:$0xff] 0.0
    %55 = vst [vmem:[%s2 + $0x138] sm:$0xff] 0.0
    %56 = vst [vmem:[%s2 + $0x140] sm:$0xff] 0.0
    %57 = vst [vmem:[%s2 + $0x148] sm:$0xff] 0.0
    %58 = vst [vmem:[%s2 + $0x150] sm:$0xff] 0.0
    %59 = vst [vmem:[%s2 + $0x158] sm:$0xff] 0.0
    %60 = vst [vmem:[%s2 + $0x160] sm:$0xff] 0.0
    %61 = vst [vmem:[%s2 + $0x168] sm:$0xff] 0.0
    %62 = vst [vmem:[%s2 + $0x170] sm:$0xff] 0.0
    %63 = vst [vmem:[%s2 + $0x178] sm:$0xff] 0.0
    %64 = vst [vmem:[%s2 + $0x180] sm:$0xff] 0.0
    %65 = vst [vmem:[%s2 + $0x188] sm:$0xff] 0.0
    %66 = vst [vmem:[%s2 + $0x190] sm:$0xff] 0.0
    %67 = vst [vmem:[%s2 + $0x198] sm:$0xff] 0.0
    %68 = vst [vmem:[%s2 + $0x1a0] sm:$0xff] 0.0
    %69 = vst [vmem:[%s2 + $0x1a8] sm:$0xff] 0.0
    %70 = vst [vmem:[%s2 + $0x1b0] sm:$0xff] 0.0
    %71 = vst [vmem:[%s2 + $0x1b8] sm:$0xff] 0.0
    %72 = vst [vmem:[%s2 + $0x1c0] sm:$0xff] 0.0
    %73 = vst [vmem:[%s2 + $0x1c8] sm:$0xff] 0.0
    %74 = vst [vmem:[%s2 + $0x1d0] sm:$0xff] 0.0
    %75 = vst [vmem:[%s2 + $0x1d8] sm:$0xff] 0.0
    %76 = vst [vmem:[%s2 + $0x1e0] sm:$0xff] 0.0
    %77 = vst [vmem:[%s2 + $0x1e8] sm:$0xff] 0.0
    %78 = vst [vmem:[%s2 + $0x1f0] sm:$0xff] 0.0
    %79 = vst [vmem:[%s2 + $0x1f8] sm:$0xff] 0.0
  $region13: #{custom_mse_pallas.1} parent=0 // pred_fallthru
    _
  %v80 = vld [vmem:[%s2] sm:$0xff]
  %v81 = vld [vmem:[%s2 + $0x8] sm:$0xff]
  %v82 = vld [vmem:[%s2 + $0x10] sm:$0xff]
  %v83 = vld [vmem:[%s2 + $0x18] sm:$0xff]
  %v84 = vld [vmem:[%s2 + $0x20] sm:$0xff]
  %v85 = vld [vmem:[%s2 + $0x28] sm:$0xff]
  %v86 = vld [vmem:[%s2 + $0x30] sm:$0xff]
  %v87 = vld [vmem:[%s2 + $0x38] sm:$0xff]
  %v88 = vld [vmem:[%s2 + $0x40] sm:$0xff]
  %v89 = vld [vmem:[%s2 + $0x48] sm:$0xff]
  %v90 = vld [vmem:[%s2 + $0x50] sm:$0xff]
  %v91 = vld [vmem:[%s2 + $0x58] sm:$0xff]
  %v92 = vld [vmem:[%s2 + $0x60] sm:$0xff]
  %v93 = vld [vmem:[%s2 + $0x68] sm:$0xff]
  %v94 = vld [vmem:[%s2 + $0x70] sm:$0xff]
  %v95 = vld [vmem:[%s2 + $0x78] sm:$0xff]
  %v96 = vld [vmem:[%s2 + $0x80] sm:$0xff]
  %v97 = vld [vmem:[%s2 + $0x88] sm:$0xff]
  %v98 = vld [vmem:[%s2 + $0x90] sm:$0xff]
  %v99 = vld [vmem:[%s2 + $0x98] sm:$0xff]
  %v100 = vld [vmem:[%s2 + $0xa0] sm:$0xff]
  %v101 = vld [vmem:[%s2 + $0xa8] sm:$0xff]
  %v102 = vld [vmem:[%s2 + $0xb0] sm:$0xff]
  %v103 = vld [vmem:[%s2 + $0xb8] sm:$0xff]
  %v104 = vld [vmem:[%s2 + $0xc0] sm:$0xff]
  %v105 = vld [vmem:[%s2 + $0xc8] sm:$0xff]
  %v106 = vld [vmem:[%s2 + $0xd0] sm:$0xff]
  %v107 = vld [vmem:[%s2 + $0xd8] sm:$0xff]
  %v108 = vld [vmem:[%s2 + $0xe0] sm:$0xff]
  %v109 = vld [vmem:[%s2 + $0xe8] sm:$0xff]
  %v110 = vld [vmem:[%s2 + $0xf0] sm:$0xff]
  %v111 = vld [vmem:[%s2 + $0xf8] sm:$0xff]
  %v112 = vld [vmem:[%s2 + $0x100] sm:$0xff]
  %v113 = vld [vmem:[%s2 + $0x108] sm:$0xff]
  %v114 = vld [vmem:[%s2 + $0x110] sm:$0xff]
  %v115 = vld [vmem:[%s2 + $0x118] sm:$0xff]
  %v116 = vld [vmem:[%s2 + $0x120] sm:$0xff]
  %v117 = vld [vmem:[%s2 + $0x128] sm:$0xff]
  %v118 = vld [vmem:[%s2 + $0x130] sm:$0xff]
  %v119 = vld [vmem:[%s2 + $0x138] sm:$0xff]
  %v120 = vld [vmem:[%s2 + $0x140] sm:$0xff]
  %v121 = vld [vmem:[%s2 + $0x148] sm:$0xff]
  %v122 = vld [vmem:[%s2 + $0x150] sm:$0xff]
  %v123 = vld [vmem:[%s2 + $0x158] sm:$0xff]
  %v124 = vld [vmem:[%s2 + $0x160] sm:$0xff]
  %v125 = vld [vmem:[%s2 + $0x168] sm:$0xff]
  %v126 = vld [vmem:[%s2 + $0x170] sm:$0xff]
  %v127 = vld [vmem:[%s2 + $0x178] sm:$0xff]
  %v128 = vld [vmem:[%s2 + $0x180] sm:$0xff]
  %v129 = vld [vmem:[%s2 + $0x188] sm:$0xff]
  %v130 = vld [vmem:[%s2 + $0x190] sm:$0xff]
  %v131 = vld [vmem:[%s2 + $0x198] sm:$0xff]
  %v132 = vld [vmem:[%s2 + $0x1a0] sm:$0xff]
  %v133 = vld [vmem:[%s2 + $0x1a8] sm:$0xff]
  %v134 = vld [vmem:[%s2 + $0x1b0] sm:$0xff]
  %v135 = vld [vmem:[%s2 + $0x1b8] sm:$0xff]
  %v136 = vld [vmem:[%s2 + $0x1c0] sm:$0xff]
  %v137 = vld [vmem:[%s2 + $0x1c8] sm:$0xff]
  %v138 = vld [vmem:[%s2 + $0x1d0] sm:$0xff]
  %v139 = vld [vmem:[%s2 + $0x1d8] sm:$0xff]
  %v140 = vld [vmem:[%s2 + $0x1e0] sm:$0xff]
  %v141 = vld [vmem:[%s2 + $0x1e8] sm:$0xff]
  %v142 = vld [vmem:[%s2 + $0x1f0] sm:$0xff]
  %v143 = vld [vmem:[%s2 + $0x1f8] sm:$0xff]
  %v144 = vld [vmem:[%s0] sm:$0xf]
  %v145 = vld [vmem:[%s0 + $0x4] sm:$0xf]
  %v146 = vld [vmem:[%s0 + $0x8] sm:$0xf]
  %v147 = vld [vmem:[%s0 + $0xc] sm:$0xf]
  %v148 = vld [vmem:[%s0 + $0x10] sm:$0xf]
  %v149 = vld [vmem:[%s0 + $0x14] sm:$0xf]
  %v150 = vld [vmem:[%s0 + $0x18] sm:$0xf]
  %v151 = vld [vmem:[%s0 + $0x1c] sm:$0xf]
  %v152 = vld [vmem:[%s0 + $0x20] sm:$0xf]
  %v153 = vld [vmem:[%s0 + $0x24] sm:$0xf]
  %v154 = vld [vmem:[%s0 + $0x28] sm:$0xf]
  %v155 = vld [vmem:[%s0 + $0x2c] sm:$0xf]
  %v156 = vld [vmem:[%s0 + $0x30] sm:$0xf]
  %v157 = vld [vmem:[%s0 + $0x34] sm:$0xf]
  %v158 = vld [vmem:[%s0 + $0x38] sm:$0xf]
  %v159 = vld [vmem:[%s0 + $0x3c] sm:$0xf]
  %v160 = vld [vmem:[%s0 + $0x40] sm:$0xf]
  %v161 = vld [vmem:[%s0 + $0x44] sm:$0xf]
  %v162 = vld [vmem:[%s0 + $0x48] sm:$0xf]
  %v163 = vld [vmem:[%s0 + $0x4c] sm:$0xf]
  %v164 = vld [vmem:[%s0 + $0x50] sm:$0xf]
  %v165 = vld [vmem:[%s0 + $0x54] sm:$0xf]
  %v166 = vld [vmem:[%s0 + $0x58] sm:$0xf]
  %v167 = vld [vmem:[%s0 + $0x5c] sm:$0xf]
  %v168 = vld [vmem:[%s0 + $0x60] sm:$0xf]
  %v169 = vld [vmem:[%s0 + $0x64] sm:$0xf]
  %v170 = vld [vmem:[%s0 + $0x68] sm:$0xf]
  %v171 = vld [vmem:[%s0 + $0x6c] sm:$0xf]
  %v172 = vld [vmem:[%s0 + $0x70] sm:$0xf]
  %v173 = vld [vmem:[%s0 + $0x74] sm:$0xf]
  %v174 = vld [vmem:[%s0 + $0x78] sm:$0xf]
  %v175 = vld [vmem:[%s0 + $0x7c] sm:$0xf]
  %v176 = vld [vmem:[%s1] sm:$0xff]
  %v209 = vunpack.c.l.b16 %v144
  %v210 = vunpack.c.l.b16 %v145
  %v211 = vunpack.c.l.b16 %v146
  %v212 = vunpack.c.l.b16 %v147
  %v213 = vunpack.c.l.b16 %v148
  %v214 = vunpack.c.l.b16 %v149
  %v215 = vunpack.c.l.b16 %v150
  %v216 = vunpack.c.l.b16 %v151
  %v217 = vunpack.c.l.b16 %v152
  %v218 = vunpack.c.l.b16 %v153
  %v219 = vunpack.c.l.b16 %v154
  %v220 = vunpack.c.l.b16 %v155
  %v221 = vunpack.c.l.b16 %v156
  %v222 = vunpack.c.l.b16 %v157
  %v223 = vunpack.c.l.b16 %v158
  %v224 = vunpack.c.l.b16 %v159
  %v225 = vunpack.c.l.b16 %v160
  %v226 = vunpack.c.l.b16 %v161
  %v227 = vunpack.c.l.b16 %v162
  %v228 = vunpack.c.l.b16 %v163
  %v229 = vunpack.c.l.b16 %v164
  %v230 = vunpack.c.l.b16 %v165
  %v231 = vunpack.c.l.b16 %v166
  %v232 = vunpack.c.l.b16 %v167
  %v233 = vunpack.c.l.b16 %v168
  %v234 = vunpack.c.l.b16 %v169
  %v235 = vunpack.c.l.b16 %v170
  %v236 = vunpack.c.l.b16 %v171
  %v237 = vunpack.c.l.b16 %v172
  %v238 = vunpack.c.l.b16 %v173
  %v239 = vunpack.c.l.b16 %v174
  %v240 = vunpack.c.l.b16 %v175
  %v241 = vpack.c.b16 %v210, %v209
  %v242 = vpack.c.b16 %v212, %v211
  %v243 = vpack.c.b16 %v214, %v213
  %v244 = vpack.c.b16 %v216, %v215
  %v245 = vpack.c.b16 %v218, %v217
  %v246 = vpack.c.b16 %v220, %v219
  %v247 = vpack.c.b16 %v222, %v221
  %v248 = vpack.c.b16 %v224, %v223
  %v249 = vpack.c.b16 %v226, %v225
  %v250 = vpack.c.b16 %v228, %v227
  %v251 = vpack.c.b16 %v230, %v229
  %v252 = vpack.c.b16 %v232, %v231
  %v253 = vpack.c.b16 %v234, %v233
  %v254 = vpack.c.b16 %v236, %v235
  %v255 = vpack.c.b16 %v238, %v237
  %v256 = vpack.c.b16 %v240, %v239
  %v258 = vunpack.c.l.b16 %v176
  %v259 = vunpack.c.h.b16 %v176
  %v260 = vpack.c.b16 %v258, %v258
  %v261 = vpack.c.b16 %v259, %v259
  %vm262 = vcmask 64512
  %v264 = vsel %vm262, %v241, 0
  %v267 = vsel %vm262, %v242, 0
  %v270 = vsel %vm262, %v243, 0
  %v273 = vsel %vm262, %v244, 0
  %v276 = vsel %vm262, %v245, 0
  %v279 = vsel %vm262, %v246, 0
  %v282 = vsel %vm262, %v247, 0
  %v285 = vsel %vm262, %v248, 0
  %v288 = vsel %vm262, %v249, 0
  %v291 = vsel %vm262, %v250, 0
  %v294 = vsel %vm262, %v251, 0
  %v297 = vsel %vm262, %v252, 0
  %v300 = vsel %vm262, %v253, 0
  %v303 = vsel %vm262, %v254, 0
  %v306 = vsel %vm262, %v255, 0
  %v309 = vsel %vm262, %v256, 0
  %vm311 = vcmask 1043456
  %v313 = vsel %vm311, %v260, 0
  %v316 = vsel %vm311, %v261, 0
  %318 = vmatprep.subr.bf16.mxu0 0
  %319 = vmatpush1.bf16.msra.mxu0 0
  %320 = vmatprep.subr.bf16.mxu0 0
  %321 = vmatpush1.bf16.msra.mxu0 0
  %322 = vmatprep.subr.bf16.mxu0 0
  %323 = vmatpush1.bf16.msra.mxu0 0
  %324 = vmatprep.subr.bf16.mxu0 0
  %325 = vmatpush1.bf16.msra.mxu0 0
  %326 = vmatprep.subr.bf16.mxu0 0
  %327 = vmatpush1.bf16.msra.mxu0 0
  %328 = vmatprep.subr.bf16.mxu0 0
  %329 = vmatpush1.bf16.msra.mxu0 0
  %330 = vmatprep.subr.bf16.mxu0 0
  %331 = vmatpush1.bf16.msra.mxu0 0
  %332 = vmatprep.subr.bf16.mxu0 %v316
  %333 = vmatpush1.bf16.msra.mxu0 %v313
  %334 = vmatprep.subr.bf16.mxu0 0
  %335 = vmatpush2.bf16.msra.mxu0 0
  %336 = vmatprep.subr.bf16.mxu0 0
  %337 = vmatpush2.bf16.msra.mxu0 0
  %338 = vmatprep.subr.bf16.mxu0 0
  %339 = vmatpush2.bf16.msra.mxu0 0
  %340 = vmatprep.subr.bf16.mxu0 0
  %341 = vmatpush2.bf16.msra.mxu0 0
  %342 = vmatprep.subr.bf16.mxu0 0
  %343 = vmatpush2.bf16.msra.mxu0 0
  %344 = vmatprep.subr.bf16.mxu0 0
  %345 = vmatpush2.bf16.msra.mxu0 0
  %346 = vmatprep.subr.bf16.mxu0 0
  %347 = vmatpush2.bf16.msra.mxu0 0
  %348 = vmatprep.subr.bf16.mxu0 0
  %349 = vmatpush2.bf16.msra.mxu0 0
  %350 = vmatprep.mubr.bf16.mxu0 0
  %351 = vmatmul.mubr.bf16.gmra.mxu0 %v264
  %v352 = vpop.f32.mrf.mxu0
  %v353 = vadd.f32 0.0, %v352
  %v354 = vpop.f32.mrf.mxu0
  %v355 = vadd.f32 0.0, %v354
  %v356 = vpop.f32.mrf.mxu0
  %v357 = vadd.f32 0.0, %v356
  %v358 = vpop.f32.mrf.mxu0
  %v359 = vadd.f32 0.0, %v358
  %360 = vmatprep.mubr.bf16.mxu0 0
  %361 = vmatmul.mubr.bf16.gmra.mxu0 %v267
  %v362 = vpop.f32.mrf.mxu0
  %v363 = vadd.f32 0.0, %v362
  %v364 = vpop.f32.mrf.mxu0
  %v365 = vadd.f32 0.0, %v364
  %v366 = vpop.f32.mrf.mxu0
  %v367 = vadd.f32 0.0, %v366
  %v368 = vpop.f32.mrf.mxu0
  %v369 = vadd.f32 0.0, %v368
  %370 = vmatprep.mubr.bf16.mxu0 0
  %371 = vmatmul.mubr.bf16.gmra.mxu0 %v270
  %v372 = vpop.f32.mrf.mxu0
  %v373 = vadd.f32 0.0, %v372
  %v374 = vpop.f32.mrf.mxu0
  %v375 = vadd.f32 0.0, %v374
  %v376 = vpop.f32.mrf.mxu0
  %v377 = vadd.f32 0.0, %v376
  %v378 = vpop.f32.mrf.mxu0
  %v379 = vadd.f32 0.0, %v378
  %380 = vmatprep.mubr.bf16.mxu0 0
  %381 = vmatmul.mubr.bf16.gmra.mxu0 %v273
  %v382 = vpop.f32.mrf.mxu0
  %v383 = vadd.f32 0.0, %v382
  %v384 = vpop.f32.mrf.mxu0
  %v385 = vadd.f32 0.0, %v384
  %v386 = vpop.f32.mrf.mxu0
  %v387 = vadd.f32 0.0, %v386
  %v388 = vpop.f32.mrf.mxu0
  %v389 = vadd.f32 0.0, %v388
  %390 = vmatprep.mubr.bf16.mxu0 0
  %391 = vmatmul.mubr.bf16.gmra.mxu0 %v276
  %v392 = vpop.f32.mrf.mxu0
  %v393 = vadd.f32 0.0, %v392
  %v394 = vpop.f32.mrf.mxu0
  %v395 = vadd.f32 0.0, %v394
  %v396 = vpop.f32.mrf.mxu0
  %v397 = vadd.f32 0.0, %v396
  %v398 = vpop.f32.mrf.mxu0
  %v399 = vadd.f32 0.0, %v398
  %400 = vmatprep.mubr.bf16.mxu0 0
  %401 = vmatmul.mubr.bf16.gmra.mxu0 %v279
  %v402 = vpop.f32.mrf.mxu0
  %v403 = vadd.f32 0.0, %v402
  %v404 = vpop.f32.mrf.mxu0
  %v405 = vadd.f32 0.0, %v404
  %v406 = vpop.f32.mrf.mxu0
  %v407 = vadd.f32 0.0, %v406
  %v408 = vpop.f32.mrf.mxu0
  %v409 = vadd.f32 0.0, %v408
  %410 = vmatprep.mubr.bf16.mxu0 0
  %411 = vmatmul.mubr.bf16.gmra.mxu0 %v282
  %v412 = vpop.f32.mrf.mxu0
  %v413 = vadd.f32 0.0, %v412
  %v414 = vpop.f32.mrf.mxu0
  %v415 = vadd.f32 0.0, %v414
  %v416 = vpop.f32.mrf.mxu0
  %v417 = vadd.f32 0.0, %v416
  %v418 = vpop.f32.mrf.mxu0
  %v419 = vadd.f32 0.0, %v418
  %420 = vmatprep.mubr.bf16.mxu0 0
  %421 = vmatmul.mubr.bf16.gmra.mxu0 %v285
  %v422 = vpop.f32.mrf.mxu0
  %v423 = vadd.f32 0.0, %v422
  %v424 = vpop.f32.mrf.mxu0
  %v425 = vadd.f32 0.0, %v424
  %v426 = vpop.f32.mrf.mxu0
  %v427 = vadd.f32 0.0, %v426
  %v428 = vpop.f32.mrf.mxu0
  %v429 = vadd.f32 0.0, %v428
  %430 = vmatprep.mubr.bf16.mxu0 0
  %431 = vmatmul.mubr.bf16.gmra.mxu0 %v288
  %v432 = vpop.f32.mrf.mxu0
  %v433 = vadd.f32 0.0, %v432
  %v434 = vpop.f32.mrf.mxu0
  %v435 = vadd.f32 0.0, %v434
  %v436 = vpop.f32.mrf.mxu0
  %v437 = vadd.f32 0.0, %v436
  %v438 = vpop.f32.mrf.mxu0
  %v439 = vadd.f32 0.0, %v438
  %440 = vmatprep.mubr.bf16.mxu0 0
  %441 = vmatmul.mubr.bf16.gmra.mxu0 %v291
  %v442 = vpop.f32.mrf.mxu0
  %v443 = vadd.f32 0.0, %v442
  %v444 = vpop.f32.mrf.mxu0
  %v445 = vadd.f32 0.0, %v444
  %v446 = vpop.f32.mrf.mxu0
  %v447 = vadd.f32 0.0, %v446
  %v448 = vpop.f32.mrf.mxu0
  %v449 = vadd.f32 0.0, %v448
  %450 = vmatprep.mubr.bf16.mxu0 0
  %451 = vmatmul.mubr.bf16.gmra.mxu0 %v294
  %v452 = vpop.f32.mrf.mxu0
  %v453 = vadd.f32 0.0, %v452
  %v454 = vpop.f32.mrf.mxu0
  %v455 = vadd.f32 0.0, %v454
  %v456 = vpop.f32.mrf.mxu0
  %v457 = vadd.f32 0.0, %v456
  %v458 = vpop.f32.mrf.mxu0
  %v459 = vadd.f32 0.0, %v458
  %460 = vmatprep.mubr.bf16.mxu0 0
  %461 = vmatmul.mubr.bf16.gmra.mxu0 %v297
  %v462 = vpop.f32.mrf.mxu0
  %v463 = vadd.f32 0.0, %v462
  %v464 = vpop.f32.mrf.mxu0
  %v465 = vadd.f32 0.0, %v464
  %v466 = vpop.f32.mrf.mxu0
  %v467 = vadd.f32 0.0, %v466
  %v468 = vpop.f32.mrf.mxu0
  %v469 = vadd.f32 0.0, %v468
  %470 = vmatprep.mubr.bf16.mxu0 0
  %471 = vmatmul.mubr.bf16.gmra.mxu0 %v300
  %v472 = vpop.f32.mrf.mxu0
  %v473 = vadd.f32 0.0, %v472
  %v474 = vpop.f32.mrf.mxu0
  %v475 = vadd.f32 0.0, %v474
  %v476 = vpop.f32.mrf.mxu0
  %v477 = vadd.f32 0.0, %v476
  %v478 = vpop.f32.mrf.mxu0
  %v479 = vadd.f32 0.0, %v478
  %480 = vmatprep.mubr.bf16.mxu0 0
  %481 = vmatmul.mubr.bf16.gmra.mxu0 %v303
  %v482 = vpop.f32.mrf.mxu0
  %v483 = vadd.f32 0.0, %v482
  %v484 = vpop.f32.mrf.mxu0
  %v485 = vadd.f32 0.0, %v484
  %v486 = vpop.f32.mrf.mxu0
  %v487 = vadd.f32 0.0, %v486
  %v488 = vpop.f32.mrf.mxu0
  %v489 = vadd.f32 0.0, %v488
  %490 = vmatprep.mubr.bf16.mxu0 0
  %491 = vmatmul.mubr.bf16.gmra.mxu0 %v306
  %v492 = vpop.f32.mrf.mxu0
  %v493 = vadd.f32 0.0, %v492
  %v494 = vpop.f32.mrf.mxu0
  %v495 = vadd.f32 0.0, %v494
  %v496 = vpop.f32.mrf.mxu0
  %v497 = vadd.f32 0.0, %v496
  %v498 = vpop.f32.mrf.mxu0
  %v499 = vadd.f32 0.0, %v498
  %500 = vmatprep.mubr.bf16.mxu0 0
  %501 = vmatmul.mubr.bf16.gmra.mxu0 %v309
  %v502 = vpop.f32.mrf.mxu0
  %v503 = vadd.f32 0.0, %v502
  %v504 = vpop.f32.mrf.mxu0
  %v505 = vadd.f32 0.0, %v504
  %v506 = vpop.f32.mrf.mxu0
  %v507 = vadd.f32 0.0, %v506
  %v508 = vpop.f32.mrf.mxu0
  %v509 = vadd.f32 0.0, %v508
  %510 = vdwg.mxu0
  %v511 = vadd.f32 %v80, %v353
  %v512 = vadd.f32 %v81, %v355
  %v513 = vadd.f32 %v82, %v357
  %v514 = vadd.f32 %v83, %v359
  %v515 = vadd.f32 %v84, %v363
  %v516 = vadd.f32 %v85, %v365
  %v517 = vadd.f32 %v86, %v367
  %v518 = vadd.f32 %v87, %v369
  %v519 = vadd.f32 %v88, %v373
  %v520 = vadd.f32 %v89, %v375
  %v521 = vadd.f32 %v90, %v377
  %v522 = vadd.f32 %v91, %v379
  %v523 = vadd.f32 %v92, %v383
  %v524 = vadd.f32 %v93, %v385
  %v525 = vadd.f32 %v94, %v387
  %v526 = vadd.f32 %v95, %v389
  %v527 = vadd.f32 %v96, %v393
  %v528 = vadd.f32 %v97, %v395
  %v529 = vadd.f32 %v98, %v397
  %v530 = vadd.f32 %v99, %v399
  %v531 = vadd.f32 %v100, %v403
  %v532 = vadd.f32 %v101, %v405
  %v533 = vadd.f32 %v102, %v407
  %v534 = vadd.f32 %v103, %v409
  %v535 = vadd.f32 %v104, %v413
  %v536 = vadd.f32 %v105, %v415
  %v537 = vadd.f32 %v106, %v417
  %v538 = vadd.f32 %v107, %v419
  %v539 = vadd.f32 %v108, %v423
  %v540 = vadd.f32 %v109, %v425
  %v541 = vadd.f32 %v110, %v427
  %v542 = vadd.f32 %v111, %v429
  %v543 = vadd.f32 %v112, %v433
  %v544 = vadd.f32 %v113, %v435
  %v545 = vadd.f32 %v114, %v437
  %v546 = vadd.f32 %v115, %v439
  %v547 = vadd.f32 %v116, %v443
  %v548 = vadd.f32 %v117, %v445
  %v549 = vadd.f32 %v118, %v447
  %v550 = vadd.f32 %v119, %v449
  %v551 = vadd.f32 %v120, %v453
  %v552 = vadd.f32 %v121, %v455
  %v553 = vadd.f32 %v122, %v457
  %v554 = vadd.f32 %v123, %v459
  %v555 = vadd.f32 %v124, %v463
  %v556 = vadd.f32 %v125, %v465
  %v557 = vadd.f32 %v126, %v467
  %v558 = vadd.f32 %v127, %v469
  %v559 = vadd.f32 %v128, %v473
  %v560 = vadd.f32 %v129, %v475
  %v561 = vadd.f32 %v130, %v477
  %v562 = vadd.f32 %v131, %v479
  %v563 = vadd.f32 %v132, %v483
  %v564 = vadd.f32 %v133, %v485
  %v565 = vadd.f32 %v134, %v487
  %v566 = vadd.f32 %v135, %v489
  %v567 = vadd.f32 %v136, %v493
  %v568 = vadd.f32 %v137, %v495
  %v569 = vadd.f32 %v138, %v497
  %v570 = vadd.f32 %v139, %v499
  %v571 = vadd.f32 %v140, %v503
  %v572 = vadd.f32 %v141, %v505
  %v573 = vadd.f32 %v142, %v507
  %v574 = vadd.f32 %v143, %v509
  %575 = vst [vmem:[%s2] sm:$0xff] %v511
  %576 = vst [vmem:[%s2 + $0x8] sm:$0xff] %v512
  %577 = vst [vmem:[%s2 + $0x10] sm:$0xff] %v513
  %578 = vst [vmem:[%s2 + $0x18] sm:$0xff] %v514
  %579 = vst [vmem:[%s2 + $0x20] sm:$0xff] %v515
  %580 = vst [vmem:[%s2 + $0x28] sm:$0xff] %v516
  %581 = vst [vmem:[%s2 + $0x30] sm:$0xff] %v517
  %582 = vst [vmem:[%s2 + $0x38] sm:$0xff] %v518
  %583 = vst [vmem:[%s2 + $0x40] sm:$0xff] %v519
  %584 = vst [vmem:[%s2 + $0x48] sm:$0xff] %v520
  %585 = vst [vmem:[%s2 + $0x50] sm:$0xff] %v521
  %586 = vst [vmem:[%s2 + $0x58] sm:$0xff] %v522
  %587 = vst [vmem:[%s2 + $0x60] sm:$0xff] %v523
  %588 = vst [vmem:[%s2 + $0x68] sm:$0xff] %v524
  %589 = vst [vmem:[%s2 + $0x70] sm:$0xff] %v525
  %590 = vst [vmem:[%s2 + $0x78] sm:$0xff] %v526
  %591 = vst [vmem:[%s2 + $0x80] sm:$0xff] %v527
  %592 = vst [vmem:[%s2 + $0x88] sm:$0xff] %v528
  %593 = vst [vmem:[%s2 + $0x90] sm:$0xff] %v529
  %594 = vst [vmem:[%s2 + $0x98] sm:$0xff] %v530
  %595 = vst [vmem:[%s2 + $0xa0] sm:$0xff] %v531
  %596 = vst [vmem:[%s2 + $0xa8] sm:$0xff] %v532
  %597 = vst [vmem:[%s2 + $0xb0] sm:$0xff] %v533
  %598 = vst [vmem:[%s2 + $0xb8] sm:$0xff] %v534
  %599 = vst [vmem:[%s2 + $0xc0] sm:$0xff] %v535
  %600 = vst [vmem:[%s2 + $0xc8] sm:$0xff] %v536
  %601 = vst [vmem:[%s2 + $0xd0] sm:$0xff] %v537
  %602 = vst [vmem:[%s2 + $0xd8] sm:$0xff] %v538
  %603 = vst [vmem:[%s2 + $0xe0] sm:$0xff] %v539
  %604 = vst [vmem:[%s2 + $0xe8] sm:$0xff] %v540
  %605 = vst [vmem:[%s2 + $0xf0] sm:$0xff] %v541
  %606 = vst [vmem:[%s2 + $0xf8] sm:$0xff] %v542
  %607 = vst [vmem:[%s2 + $0x100] sm:$0xff] %v543
  %608 = vst [vmem:[%s2 + $0x108] sm:$0xff] %v544
  %609 = vst [vmem:[%s2 + $0x110] sm:$0xff] %v545
  %610 = vst [vmem:[%s2 + $0x118] sm:$0xff] %v546
  %611 = vst [vmem:[%s2 + $0x120] sm:$0xff] %v547
  %612 = vst [vmem:[%s2 + $0x128] sm:$0xff] %v548
  %613 = vst [vmem:[%s2 + $0x130] sm:$0xff] %v549
  %614 = vst [vmem:[%s2 + $0x138] sm:$0xff] %v550
  %615 = vst [vmem:[%s2 + $0x140] sm:$0xff] %v551
  %616 = vst [vmem:[%s2 + $0x148] sm:$0xff] %v552
  %617 = vst [vmem:[%s2 + $0x150] sm:$0xff] %v553
  %618 = vst [vmem:[%s2 + $0x158] sm:$0xff] %v554
  %619 = vst [vmem:[%s2 + $0x160] sm:$0xff] %v555
  %620 = vst [vmem:[%s2 + $0x168] sm:$0xff] %v556
  %621 = vst [vmem:[%s2 + $0x170] sm:$0xff] %v557
  %622 = vst [vmem:[%s2 + $0x178] sm:$0xff] %v558
  %623 = vst [vmem:[%s2 + $0x180] sm:$0xff] %v559
  %624 = vst [vmem:[%s2 + $0x188] sm:$0xff] %v560
  %625 = vst [vmem:[%s2 + $0x190] sm:$0xff] %v561
  %626 = vst [vmem:[%s2 + $0x198] sm:$0xff] %v562
  %627 = vst [vmem:[%s2 + $0x1a0] sm:$0xff] %v563
  %628 = vst [vmem:[%s2 + $0x1a8] sm:$0xff] %v564
  %629 = vst [vmem:[%s2 + $0x1b0] sm:$0xff] %v565
  %630 = vst [vmem:[%s2 + $0x1b8] sm:$0xff] %v566
  %631 = vst [vmem:[%s2 + $0x1c0] sm:$0xff] %v567
  %632 = vst [vmem:[%s2 + $0x1c8] sm:$0xff] %v568
  %633 = vst [vmem:[%s2 + $0x1d0] sm:$0xff] %v569
  %634 = vst [vmem:[%s2 + $0x1d8] sm:$0xff] %v570
  %635 = vst [vmem:[%s2 + $0x1e0] sm:$0xff] %v571
  %636 = vst [vmem:[%s2 + $0x1e8] sm:$0xff] %v572
  %637 = vst [vmem:[%s2 + $0x1f0] sm:$0xff] %v573
  %638 = vst [vmem:[%s2 + $0x1f8] sm:$0xff] %v574
  // Predicated region
  $region14: #{custom_mse_pallas.1} parent=0 // pred_check
    %p639 = pneg %p12
  $region15: #{custom_mse_pallas.1} parent=0 // pred_check_branch
    %641 = sbr.rel (%p639) target = $region17
  $region16: #{custom_mse_pallas.1} parent=0 // pred_region
    %v642 = vld [vmem:[%s2] sm:$0xff]
    %v643 = vld [vmem:[%s2 + $0x8] sm:$0xff]
    %v644 = vld [vmem:[%s2 + $0x10] sm:$0xff]
    %v645 = vld [vmem:[%s2 + $0x18] sm:$0xff]
    %v646 = vld [vmem:[%s2 + $0x20] sm:$0xff]
    %v647 = vld [vmem:[%s2 + $0x28] sm:$0xff]
    %v648 = vld [vmem:[%s2 + $0x30] sm:$0xff]
    %v649 = vld [vmem:[%s2 + $0x38] sm:$0xff]
    %v650 = vld [vmem:[%s2 + $0x40] sm:$0xff]
    %v651 = vld [vmem:[%s2 + $0x48] sm:$0xff]
    %v652 = vld [vmem:[%s2 + $0x50] sm:$0xff]
    %v653 = vld [vmem:[%s2 + $0x58] sm:$0xff]
    %v654 = vld [vmem:[%s2 + $0x60] sm:$0xff]
    %v655 = vld [vmem:[%s2 + $0x68] sm:$0xff]
    %v656 = vld [vmem:[%s2 + $0x70] sm:$0xff]
    %v657 = vld [vmem:[%s2 + $0x78] sm:$0xff]
    %v658 = vld [vmem:[%s2 + $0x80] sm:$0xff]
    %v659 = vld [vmem:[%s2 + $0x88] sm:$0xff]
    %v660 = vld [vmem:[%s2 + $0x90] sm:$0xff]
    %v661 = vld [vmem:[%s2 + $0x98] sm:$0xff]
    %v662 = vld [vmem:[%s2 + $0xa0] sm:$0xff]
    %v663 = vld [vmem:[%s2 + $0xa8] sm:$0xff]
    %v664 = vld [vmem:[%s2 + $0xb0] sm:$0xff]
    %v665 = vld [vmem:[%s2 + $0xb8] sm:$0xff]
    %v666 = vld [vmem:[%s2 + $0xc0] sm:$0xff]
    %v667 = vld [vmem:[%s2 + $0xc8] sm:$0xff]
    %v668 = vld [vmem:[%s2 + $0xd0] sm:$0xff]
    %v669 = vld [vmem:[%s2 + $0xd8] sm:$0xff]
    %v670 = vld [vmem:[%s2 + $0xe0] sm:$0xff]
    %v671 = vld [vmem:[%s2 + $0xe8] sm:$0xff]
    %v672 = vld [vmem:[%s2 + $0xf0] sm:$0xff]
    %v673 = vld [vmem:[%s2 + $0xf8] sm:$0xff]
    %v674 = vld [vmem:[%s2 + $0x100] sm:$0xff]
    %v675 = vld [vmem:[%s2 + $0x108] sm:$0xff]
    %v676 = vld [vmem:[%s2 + $0x110] sm:$0xff]
    %v677 = vld [vmem:[%s2 + $0x118] sm:$0xff]
    %v678 = vld [vmem:[%s2 + $0x120] sm:$0xff]
    %v679 = vld [vmem:[%s2 + $0x128] sm:$0xff]
    %v680 = vld [vmem:[%s2 + $0x130] sm:$0xff]
    %v681 = vld [vmem:[%s2 + $0x138] sm:$0xff]
    %v682 = vld [vmem:[%s2 + $0x140] sm:$0xff]
    %v683 = vld [vmem:[%s2 + $0x148] sm:$0xff]
    %v684 = vld [vmem:[%s2 + $0x150] sm:$0xff]
    %v685 = vld [vmem:[%s2 + $0x158] sm:$0xff]
    %v686 = vld [vmem:[%s2 + $0x160] sm:$0xff]
    %v687 = vld [vmem:[%s2 + $0x168] sm:$0xff]
    %v688 = vld [vmem:[%s2 + $0x170] sm:$0xff]
    %v689 = vld [vmem:[%s2 + $0x178] sm:$0xff]
    %v690 = vld [vmem:[%s2 + $0x180] sm:$0xff]
    %v691 = vld [vmem:[%s2 + $0x188] sm:$0xff]
    %v692 = vld [vmem:[%s2 + $0x190] sm:$0xff]
    %v693 = vld [vmem:[%s2 + $0x198] sm:$0xff]
    %v694 = vld [vmem:[%s2 + $0x1a0] sm:$0xff]
    %v695 = vld [vmem:[%s2 + $0x1a8] sm:$0xff]
    %v696 = vld [vmem:[%s2 + $0x1b0] sm:$0xff]
    %v697 = vld [vmem:[%s2 + $0x1b8] sm:$0xff]
    %v698 = vld [vmem:[%s2 + $0x1c0] sm:$0xff]
    %v699 = vld [vmem:[%s2 + $0x1c8] sm:$0xff]
    %v700 = vld [vmem:[%s2 + $0x1d0] sm:$0xff]
    %v701 = vld [vmem:[%s2 + $0x1d8] sm:$0xff]
    %v702 = vld [vmem:[%s2 + $0x1e0] sm:$0xff]
    %v703 = vld [vmem:[%s2 + $0x1e8] sm:$0xff]
    %v704 = vld [vmem:[%s2 + $0x1f0] sm:$0xff]
    %v705 = vld [vmem:[%s2 + $0x1f8] sm:$0xff]
    %v706 = vmul.f32 %v642, 0.125
    %v707 = vmul.f32 %v643, 0.125
    %v708 = vmul.f32 %v644, 0.125
    %v709 = vmul.f32 %v645, 0.125
    %v710 = vmul.f32 %v646, 0.125
    %v711 = vmul.f32 %v647, 0.125
    %v712 = vmul.f32 %v648, 0.125
    %v713 = vmul.f32 %v649, 0.125
    %v714 = vmul.f32 %v650, 0.125
    %v715 = vmul.f32 %v651, 0.125
    %v716 = vmul.f32 %v652, 0.125
    %v717 = vmul.f32 %v653, 0.125
    %v718 = vmul.f32 %v654, 0.125
    %v719 = vmul.f32 %v655, 0.125
    %v720 = vmul.f32 %v656, 0.125
    %v721 = vmul.f32 %v657, 0.125
    %v722 = vmul.f32 %v658, 0.125
    %v723 = vmul.f32 %v659, 0.125
    %v724 = vmul.f32 %v660, 0.125
    %v725 = vmul.f32 %v661, 0.125
    %v726 = vmul.f32 %v662, 0.125
    %v727 = vmul.f32 %v663, 0.125
    %v728 = vmul.f32 %v664, 0.125
    %v729 = vmul.f32 %v665, 0.125
    %v730 = vmul.f32 %v666, 0.125
    %v731 = vmul.f32 %v667, 0.125
    %v732 = vmul.f32 %v668, 0.125
    %v733 = vmul.f32 %v669, 0.125
    %v734 = vmul.f32 %v670, 0.125
    %v735 = vmul.f32 %v671, 0.125
    %v736 = vmul.f32 %v672, 0.125
    %v737 = vmul.f32 %v673, 0.125
    %v738 = vmul.f32 %v674, 0.125
    %v739 = vmul.f32 %v675, 0.125
    %v740 = vmul.f32 %v676, 0.125
    %v741 = vmul.f32 %v677, 0.125
    %v742 = vmul.f32 %v678, 0.125
    %v743 = vmul.f32 %v679, 0.125
    %v744 = vmul.f32 %v680, 0.125
    %v745 = vmul.f32 %v681, 0.125
    %v746 = vmul.f32 %v682, 0.125
    %v747 = vmul.f32 %v683, 0.125
    %v748 = vmul.f32 %v684, 0.125
    %v749 = vmul.f32 %v685, 0.125
    %v750 = vmul.f32 %v686, 0.125
    %v751 = vmul.f32 %v687, 0.125
    %v752 = vmul.f32 %v688, 0.125
    %v753 = vmul.f32 %v689, 0.125
    %v754 = vmul.f32 %v690, 0.125
    %v755 = vmul.f32 %v691, 0.125
    %v756 = vmul.f32 %v692, 0.125
    %v757 = vmul.f32 %v693, 0.125
    %v758 = vmul.f32 %v694, 0.125
    %v759 = vmul.f32 %v695, 0.125
    %v760 = vmul.f32 %v696, 0.125
    %v761 = vmul.f32 %v697, 0.125
    %v762 = vmul.f32 %v698, 0.125
    %v763 = vmul.f32 %v699, 0.125
    %v764 = vmul.f32 %v700, 0.125
    %v765 = vmul.f32 %v701, 0.125
    %v766 = vmul.f32 %v702, 0.125
    %v767 = vmul.f32 %v703, 0.125
    %v768 = vmul.f32 %v704, 0.125
    %v769 = vmul.f32 %v705, 0.125
    %770 = vst [vmem:[%s2] sm:$0xff] %v706
    %771 = vst [vmem:[%s2 + $0x8] sm:$0xff] %v707
    %772 = vst [vmem:[%s2 + $0x10] sm:$0xff] %v708
    %773 = vst [vmem:[%s2 + $0x18] sm:$0xff] %v709
    %774 = vst [vmem:[%s2 + $0x20] sm:$0xff] %v710
    %775 = vst [vmem:[%s2 + $0x28] sm:$0xff] %v711
    %776 = vst [vmem:[%s2 + $0x30] sm:$0xff] %v712
    %777 = vst [vmem:[%s2 + $0x38] sm:$0xff] %v713
    %778 = vst [vmem:[%s2 + $0x40] sm:$0xff] %v714
    %779 = vst [vmem:[%s2 + $0x48] sm:$0xff] %v715
    %780 = vst [vmem:[%s2 + $0x50] sm:$0xff] %v716
    %781 = vst [vmem:[%s2 + $0x58] sm:$0xff] %v717
    %782 = vst [vmem:[%s2 + $0x60] sm:$0xff] %v718
    %783 = vst [vmem:[%s2 + $0x68] sm:$0xff] %v719
    %784 = vst [vmem:[%s2 + $0x70] sm:$0xff] %v720
    %785 = vst [vmem:[%s2 + $0x78] sm:$0xff] %v721
    %786 = vst [vmem:[%s2 + $0x80] sm:$0xff] %v722
    %787 = vst [vmem:[%s2 + $0x88] sm:$0xff] %v723
    %788 = vst [vmem:[%s2 + $0x90] sm:$0xff] %v724
    %789 = vst [vmem:[%s2 + $0x98] sm:$0xff] %v725
    %790 = vst [vmem:[%s2 + $0xa0] sm:$0xff] %v726
    %791 = vst [vmem:[%s2 + $0xa8] sm:$0xff] %v727
    %792 = vst [vmem:[%s2 + $0xb0] sm:$0xff] %v728
    %793 = vst [vmem:[%s2 + $0xb8] sm:$0xff] %v729
    %794 = vst [vmem:[%s2 + $0xc0] sm:$0xff] %v730
    %795 = vst [vmem:[%s2 + $0xc8] sm:$0xff] %v731
    %796 = vst [vmem:[%s2 + $0xd0] sm:$0xff] %v732
    %797 = vst [vmem:[%s2 + $0xd8] sm:$0xff] %v733
    %798 = vst [vmem:[%s2 + $0xe0] sm:$0xff] %v734
    %799 = vst [vmem:[%s2 + $0xe8] sm:$0xff] %v735
    %800 = vst [vmem:[%s2 + $0xf0] sm:$0xff] %v736
    %801 = vst [vmem:[%s2 + $0xf8] sm:$0xff] %v737
    %802 = vst [vmem:[%s2 + $0x100] sm:$0xff] %v738
    %803 = vst [vmem:[%s2 + $0x108] sm:$0xff] %v739
    %804 = vst [vmem:[%s2 + $0x110] sm:$0xff] %v740
    %805 = vst [vmem:[%s2 + $0x118] sm:$0xff] %v741
    %806 = vst [vmem:[%s2 + $0x120] sm:$0xff] %v742
    %807 = vst [vmem:[%s2 + $0x128] sm:$0xff] %v743
    %808 = vst [vmem:[%s2 + $0x130] sm:$0xff] %v744
    %809 = vst [vmem:[%s2 + $0x138] sm:$0xff] %v745
    %810 = vst [vmem:[%s2 + $0x140] sm:$0xff] %v746
    %811 = vst [vmem:[%s2 + $0x148] sm:$0xff] %v747
    %812 = vst [vmem:[%s2 + $0x150] sm:$0xff] %v748
    %813 = vst [vmem:[%s2 + $0x158] sm:$0xff] %v749
    %814 = vst [vmem:[%s2 + $0x160] sm:$0xff] %v750
    %815 = vst [vmem:[%s2 + $0x168] sm:$0xff] %v751
    %816 = vst [vmem:[%s2 + $0x170] sm:$0xff] %v752
    %817 = vst [vmem:[%s2 + $0x178] sm:$0xff] %v753
    %818 = vst [vmem:[%s2 + $0x180] sm:$0xff] %v754
    %819 = vst [vmem:[%s2 + $0x188] sm:$0xff] %v755
    %820 = vst [vmem:[%s2 + $0x190] sm:$0xff] %v756
    %821 = vst [vmem:[%s2 + $0x198] sm:$0xff] %v757
    %822 = vst [vmem:[%s2 + $0x1a0] sm:$0xff] %v758
    %823 = vst [vmem:[%s2 + $0x1a8] sm:$0xff] %v759
    %824 = vst [vmem:[%s2 + $0x1b0] sm:$0xff] %v760
    %825 = vst [vmem:[%s2 + $0x1b8] sm:$0xff] %v761
    %826 = vst [vmem:[%s2 + $0x1c0] sm:$0xff] %v762
    %827 = vst [vmem:[%s2 + $0x1c8] sm:$0xff] %v763
    %828 = vst [vmem:[%s2 + $0x1d0] sm:$0xff] %v764
    %829 = vst [vmem:[%s2 + $0x1d8] sm:$0xff] %v765
    %830 = vst [vmem:[%s2 + $0x1e0] sm:$0xff] %v766
    %831 = vst [vmem:[%s2 + $0x1e8] sm:$0xff] %v767
    %832 = vst [vmem:[%s2 + $0x1f0] sm:$0xff] %v768
    %833 = vst [vmem:[%s2 + $0x1f8] sm:$0xff] %v769
  $region17: #{custom_mse_pallas.1} parent=0 // pred_fallthru
    _
  // Predicated region
  $region18: #{custom_mse_pallas.1} parent=0 // pred_check
    _
  $region19: #{custom_mse_pallas.1} parent=0 // pred_check_branch
    %835 = sbr.rel (0) target = $region21
  $region20: #{custom_mse_pallas.1} parent=0 // pred_region
    _
  $region21: #{custom_mse_pallas.1} parent=0 // pred_fallthru
    _
  // Predicated region
  $region22: #{custom_mse_pallas.1} parent=0 // pred_check
    _
  $region23: #{custom_mse_pallas.1} parent=0 // pred_check_branch
    %837 = sbr.rel (0) target = $region25
  $region24: #{custom_mse_pallas.1} parent=0 // pred_region
    _
  $region25: #{custom_mse_pallas.1} parent=0 // pred_fallthru
    _

</llo_original>
